<compile_context>
chip_gen: v6e
topology: v6e:2x2x1
jax: 0.10.0
libtpu: 0.0.40
codegen_flags: <defaults>
</compile_context>

<pallas_src>
import functools

import numpy as np
import jax
import jax.numpy as jnp
from jax.experimental import pallas as pl
from jax.experimental.pallas import tpu as pltpu


PSP_SIZES = (1, 3, 6, 8)


def _psp_pool_matrix(H, W, sizes=PSP_SIZES):
    """AdaptiveAvgPool2d(size) + flatten + concat, expressed as a (H*W, S) matrix.

    Matches torch semantics: bin i spans [floor(i*H/s), ceil((i+1)*H/s)).
    """
    cols = []
    for s in sizes:
        for i in range(s):
            hs = (i * H) // s
            he = -((-(i + 1) * H) // s)          # ceil((i+1)*H/s)
            for j in range(s):
                ws = (j * W) // s
                we = -((-(j + 1) * W) // s)
                m = np.zeros((H, W), dtype=np.float32)
                m[hs:he, ws:we] = 1.0 / float((he - hs) * (we - ws))
                cols.append(m.reshape(-1))
    return np.stack(cols, axis=1)                # (H*W, S)


def _round_up(x, m):
    return ((x + m - 1) // m) * m


def _choose_hw_tile(HW, cap=1024):
    """Largest HW tile <= cap that is a multiple of 128 and divides HW; else full HW."""
    if HW <= cap:
        return HW
    for t in range(cap, 127, -128):
        if t % 128 == 0 and HW % t == 0:
            return t
    return HW   # fallback: whole axis as one block (always a legal block shape)


def _pad_last(a, target):
    pad = target - a.shape[-1]
    if pad == 0:
        return a
    cfg = [(0, 0)] * (a.ndim - 1) + [(0, pad)]
    return jnp.pad(a, cfg)


def _apam_kernel(x_ref, xp_ref, k_ref, wqg_ref, bqg_ref, o_ref, *, n_key, s_valid):
    x = x_ref[0]                                  # (C, tHW)        bf16
    xp = xp_ref[0]                                # (C, S_pad)      bf16 (pad cols are 0)
    k = k_ref[0]                                  # (K, S_pad)      f32

    # Packed 1x1 convs: [query_conv ; gamma_conv] as one channel-dim matmul + bias.
    qg = jnp.dot(wqg_ref[...], x, preferred_element_type=jnp.float32) + bqg_ref[...]
    q = qg[:n_key]                                # (K, tHW)
    g = jax.nn.sigmoid(qg[n_key:n_key + 1])       # (1, tHW)

    # energy[hw, s] = sum_k q[k, hw] * k[k, s]   (proj_query @ proj_key)
    energy = jax.lax.dot_general(q, k, (((0,), (0,)), ((), ())),
                                 preferred_element_type=jnp.float32)   # (tHW, S_pad)

    # Mask the zero-padded key columns so they get zero attention mass.
    if s_valid < energy.shape[-1]:
        col = jax.lax.broadcasted_iota(jnp.int32, energy.shape, 1)
        energy = jnp.where(col < s_valid, energy, jnp.float32(-1e30))

    # softmax over S (f32, max-subtracted); reciprocal goes to the EUP slot.
    e = energy - jnp.max(energy, axis=-1, keepdims=True)
    ex = jnp.exp(e)
    attn = ex * pl.reciprocal(jnp.sum(ex, axis=-1, keepdims=True), approx=True)

    # out[c, hw] = sum_s xp[c, s] * attn[hw, s]   (proj_value @ attention^T)
    out = jax.lax.dot_general(xp, attn.astype(xp.dtype), (((1,), (1,)), ((), ())),
                              preferred_element_type=jnp.float32)      # (C, tHW)

    # gamma gate
    o_ref[0] = (1.0 - g) * out + g * x.astype(jnp.float32)


def apam_forward(x, params, psp_sizes=PSP_SIZES, hw_tile_cap=1024):
    B, C, H, W = x.shape
    HW = H * W
    K = params["wq"].shape[0]

    pmat = jnp.asarray(_psp_pool_matrix(H, W, psp_sizes))              # (HW, S) f32
    S = pmat.shape[1]
    S_pad = _round_up(max(S, 128), 128)

    x_f32 = x.reshape(B, C, HW).astype(jnp.float32)

    # PSP pooling + key conv: tiny per-batch tensors, computed once in f32 here,
    # then padded to a lane-dense S and handed to the kernel.
    xp = jnp.einsum('bch,hs->bcs', x_f32, pmat)                        # (B, C, S)
    k = jnp.einsum('kc,bcs->bks', params["wk"], xp) + params["bk"][None]  # (B, K, S)
    xp_bf = _pad_last(xp, S_pad).astype(jnp.bfloat16)                  # (B, C, S_pad)
    k_f32 = _pad_last(k, S_pad).astype(jnp.float32)                    # (B, K, S_pad)

    # Pack query_conv and gamma_conv into one weight/bias pair.
    wqg = jnp.concatenate([params["wq"], params["wg"]], axis=0).astype(jnp.bfloat16)  # (K+1, C)
    bqg = jnp.concatenate([params["bq"], params["bg"]], axis=0).astype(jnp.float32)   # (K+1, 1)

    x_bf = x_f32.astype(jnp.bfloat16)                                  # (B, C, HW)

    tHW = _choose_hw_tile(HW, hw_tile_cap)
    n_t = HW // tHW

    kernel = functools.partial(_apam_kernel, n_key=K, s_valid=S)

    out_flat = pl.pallas_call(
        kernel,
        out_shape=jax.ShapeDtypeStruct((B, C, HW), jnp.float32),
        grid=(B, n_t),
        in_specs=[
            pl.BlockSpec((1, C, tHW), lambda b, t: (b, 0, t)),         # x tile (bf16)
            pl.BlockSpec((1, C, S_pad), lambda b, t: (b, 0, 0)),       # xp (bf16)
            pl.BlockSpec((1, K, S_pad), lambda b, t: (b, 0, 0)),       # proj_key (f32)
            pl.BlockSpec((K + 1, C), lambda b, t: (0, 0)),             # packed q/gamma weight
            pl.BlockSpec((K + 1, 1), lambda b, t: (0, 0)),             # packed q/gamma bias
        ],
        out_specs=pl.BlockSpec((1, C, tHW), lambda b, t: (b, 0, t)),
        compiler_params=pltpu.CompilerParams(
            dimension_semantics=("parallel", "parallel"),
            vmem_limit_bytes=32 * 1024 * 1024,
        ),
    )(x_bf, xp_bf, k_f32, wqg, bqg)

    return out_flat.reshape(B, C, H, W)


def apam_ref(x, params, psp_sizes=PSP_SIZES):
    """Pure-JAX f32 reference (mirrors the PyTorch forward) for correctness."""
    B, C, H, W = x.shape
    pmat = jnp.asarray(_psp_pool_matrix(H, W, psp_sizes))
    xf = x.reshape(B, C, H * W)
    xp = jnp.einsum('bch,hs->bcs', xf, pmat)
    q = jnp.einsum('kc,bch->bkh', params["wq"], xf) + params["bq"][None]
    k = jnp.einsum('kc,bcs->bks', params["wk"], xp) + params["bk"][None]
    energy = jnp.einsum('bkh,bks->bhs', q, k)
    attn = jax.nn.softmax(energy, axis=-1)
    out = jnp.einsum('bcs,bhs->bch', xp, attn)
    g = jax.nn.sigmoid(jnp.einsum('oc,bch->boh', params["wg"], xf) + params["bg"][None])
    out = (1.0 - g) * out + g * xf
    return out.reshape(B, C, H, W)


if __name__ == "__main__":
    B, C, H, W = 2, 4, 16, 16      # in_dim = 4
    K = 8                          # key_dim = 8 (value_dim/out_dim unused in forward)

    root = jax.random.PRNGKey(0)
    kx, kwq, kbq, kwk, kbk, kwg, kbg = jax.random.split(root, 7)

    x = jax.random.normal(kx, (B, C, H, W), dtype=jnp.float32)
    params = {
        "wq": 0.1 * jax.random.normal(kwq, (K, C), dtype=jnp.float32),
        "bq": 0.1 * jax.random.normal(kbq, (K, 1), dtype=jnp.float32),
        "wk": 0.1 * jax.random.normal(kwk, (K, C), dtype=jnp.float32),
        "bk": 0.1 * jax.random.normal(kbk, (K, 1), dtype=jnp.float32),
        "wg": 0.1 * jax.random.normal(kwg, (1, C), dtype=jnp.float32),
        "bg": 0.1 * jax.random.normal(kbg, (1, 1), dtype=jnp.float32),
    }

    out = jax.block_until_ready(apam_forward(x, params))
    ref = jax.block_until_ready(apam_ref(x, params))

    assert out.shape == (B, C, H, W)
    # bf16 inputs + approx reciprocal => relaxed tolerance vs the f32 reference.
    np.testing.assert_allclose(np.asarray(out), np.asarray(ref), rtol=3e-2, atol=3e-2)
    print("KERNEL_OK")
</pallas_src>

<mosaic_0001>
module attributes {stable_mosaic.version = 11 : i64} {
  func.func @_apam_kernel(%arg0: i32, %arg1: i32, %arg2: memref<1x4x256xbf16, #tpu.memory_space<vmem>>, %arg3: memref<1x4x128xbf16, #tpu.memory_space<vmem>>, %arg4: memref<1x8x128xf32, #tpu.memory_space<vmem>>, %arg5: memref<9x4xbf16, #tpu.memory_space<vmem>>, %arg6: memref<9x1xf32, #tpu.memory_space<vmem>>, %arg7: memref<1x4x256xf32, #tpu.memory_space<vmem>>) attributes {dimension_semantics = [#tpu.dimension_semantics<parallel>, #tpu.dimension_semantics<parallel>], iteration_bounds = array<i64: 2, 1>, scalar_prefetch = 0 : i64, scratch_operands = 0 : i64, tpu.core_type = #tpu.core_type<tc>, window_params = [{transform_indices = @transform_0, window_bounds = array<i64: 1, 4, 256>}, {transform_indices = @transform_1, window_bounds = array<i64: 1, 4, 128>}, {transform_indices = @transform_2, window_bounds = array<i64: 1, 8, 128>}, {pipeline_mode = #tpu.pipeline_mode<synchronous>, transform_indices = @transform_3, window_bounds = array<i64: 9, 4>}, {pipeline_mode = #tpu.pipeline_mode<synchronous>, transform_indices = @transform_4, window_bounds = array<i64: 9, 1>}, {transform_indices = @transform_5, window_bounds = array<i64: 1, 4, 256>}]} {
    %c0 = arith.constant 0 : index
    %c0_0 = arith.constant 0 : index
    %c0_1 = arith.constant 0 : index
    %0 = vector.load %arg2[%c0, %c0_0, %c0_1] : memref<1x4x256xbf16, #tpu.memory_space<vmem>>, vector<1x4x256xbf16>
    %1 = vector.shape_cast %0 : vector<1x4x256xbf16> to vector<4x256xbf16>
    %c0_2 = arith.constant 0 : index
    %c0_3 = arith.constant 0 : index
    %c0_4 = arith.constant 0 : index
    %2 = vector.load %arg3[%c0_2, %c0_3, %c0_4] : memref<1x4x128xbf16, #tpu.memory_space<vmem>>, vector<1x4x128xbf16>
    %3 = vector.shape_cast %2 : vector<1x4x128xbf16> to vector<4x128xbf16>
    %c0_5 = arith.constant 0 : index
    %c0_6 = arith.constant 0 : index
    %c0_7 = arith.constant 0 : index
    %4 = vector.load %arg4[%c0_5, %c0_6, %c0_7] : memref<1x8x128xf32, #tpu.memory_space<vmem>>, vector<1x8x128xf32>
    %5 = vector.shape_cast %4 : vector<1x8x128xf32> to vector<8x128xf32>
    %c0_8 = arith.constant 0 : index
    %c0_9 = arith.constant 0 : index
    %6 = vector.load %arg5[%c0_8, %c0_9] : memref<9x4xbf16, #tpu.memory_space<vmem>>, vector<9x4xbf16>
    %cst = arith.constant dense<0.000000e+00> : vector<9x256xf32>
    %7 = tpu.matmul %6, %1, %cst {dimension_numbers = #tpu.dot_dimension_numbers<[1], [0], [0], [1], [0, 0, 1, 1], [], []>} : vector<9x4xbf16>, vector<4x256xbf16>, vector<9x256xf32> -> vector<9x256xf32>
    %c0_10 = arith.constant 0 : index
    %c0_11 = arith.constant 0 : index
    %8 = vector.load %arg6[%c0_10, %c0_11] : memref<9x1xf32, #tpu.memory_space<vmem>>, vector<9x1xf32>
    %9 = vector.broadcast %8 : vector<9x1xf32> to vector<9x256xf32>
    %10 = arith.addf %7, %9 : vector<9x256xf32>
    %11 = vector.extract_strided_slice %10 {offsets = [0, 0], sizes = [8, 256], strides = [1, 1]} : vector<9x256xf32> to vector<8x256xf32>
    %12 = vector.extract_strided_slice %10 {offsets = [8, 0], sizes = [1, 256], strides = [1, 1]} : vector<9x256xf32> to vector<1x256xf32>
    %13 = arith.negf %12 : vector<1x256xf32>
    %14 = math.exp %13 : vector<1x256xf32>
    %cst_12 = arith.constant 1.000000e+00 : f32
    %15 = vector.broadcast %cst_12 : f32 to vector<1x256xf32>
    %16 = arith.addf %15, %14 : vector<1x256xf32>
    %17 = arith.divf %15, %16 : vector<1x256xf32>
    %cst_13 = arith.constant dense<0.000000e+00> : vector<256x128xf32>
    %18 = tpu.matmul %11, %5, %cst_13 {dimension_numbers = #tpu.dot_dimension_numbers<[0], [0], [1], [1], [0, 1, 1, 1], [], []>} : vector<8x256xf32>, vector<8x128xf32>, vector<256x128xf32> -> vector<256x128xf32>
    %19 = tpu.iota {dimensions = array<i32: 1>} : vector<256x128xi32>
    %c110_i32 = arith.constant 110 : i32
    %20 = vector.broadcast %c110_i32 : i32 to vector<256x128xi32>
    %21 = arith.cmpi slt, %19, %20 : vector<256x128xi32>
    %cst_14 = arith.constant -1.000000e+30 : f32
    %22 = vector.broadcast %cst_14 : f32 to vector<256x128xf32>
    %23 = arith.select %21, %18, %22 : vector<256x128xi1>, vector<256x128xf32>
    %cst_15 = arith.constant dense<0xFF800000> : vector<256xf32>
    %24 = vector.multi_reduction <maximumf>, %23, %cst_15 [1] : vector<256x128xf32> to vector<256xf32>
    %25 = vector.shape_cast %24 : vector<256xf32> to vector<256x1xf32>
    %26 = vector.broadcast %25 : vector<256x1xf32> to vector<256x128xf32>
    %27 = arith.subf %23, %26 : vector<256x128xf32>
    %28 = math.exp %27 : vector<256x128xf32>
    %cst_16 = arith.constant dense<0.000000e+00> : vector<256xf32>
    %29 = vector.multi_reduction <add>, %28, %cst_16 [1] : vector<256x128xf32> to vector<256xf32>
    %30 = vector.shape_cast %29 : vector<256xf32> to vector<256x1xf32>
    %31 = tpu.reciprocal %30 {approx = true} : vector<256x1xf32> -> vector<256x1xf32>
    %32 = vector.broadcast %31 : vector<256x1xf32> to vector<256x128xf32>
    %33 = arith.mulf %28, %32 : vector<256x128xf32>
    %34 = arith.truncf %33 : vector<256x128xf32> to vector<256x128xbf16>
    %cst_17 = arith.constant dense<0.000000e+00> : vector<4x256xf32>
    %35 = tpu.matmul %3, %34, %cst_17 {dimension_numbers = #tpu.dot_dimension_numbers<[1], [1], [0], [0], [0, 0, 1, 0], [], []>} : vector<4x128xbf16>, vector<256x128xbf16>, vector<4x256xf32> -> vector<4x256xf32>
    %cst_18 = arith.constant 1.000000e+00 : f32
    %36 = vector.broadcast %cst_18 : f32 to vector<1x256xf32>
    %37 = arith.subf %36, %17 : vector<1x256xf32>
    %38 = vector.broadcast %37 : vector<1x256xf32> to vector<4x256xf32>
    %39 = arith.mulf %38, %35 : vector<4x256xf32>
    %40 = arith.extf %1 : vector<4x256xbf16> to vector<4x256xf32>
    %41 = vector.broadcast %17 : vector<1x256xf32> to vector<4x256xf32>
    %42 = arith.mulf %41, %40 : vector<4x256xf32>
    %43 = arith.addf %39, %42 : vector<4x256xf32>
    %c0_19 = arith.constant 0 : index
    %c0_20 = arith.constant 0 : index
    %c0_21 = arith.constant 0 : index
    %44 = vector.load %arg7[%c0_19, %c0_20, %c0_21] : memref<1x4x256xf32, #tpu.memory_space<vmem>>, vector<1x4x256xf32>
    %45 = vector.shape_cast %44 : vector<1x4x256xf32> to vector<4x256xf32>
    %46 = vector.shape_cast %43 : vector<4x256xf32> to vector<1x4x256xf32>
    tpu.vector_store %arg7[%c0_19, %c0_20, %c0_21], %46 {strides = array<i32>} : memref<1x4x256xf32, #tpu.memory_space<vmem>>, vector<1x4x256xf32>,
    return
  }
  func.func @transform_0(%arg0: i32, %arg1: i32) -> (i32, i32, i32) {
    %c0_i32 = arith.constant 0 : i32
    %c0_i32_0 = arith.constant 0 : i32
    return %arg0, %c0_i32, %arg1 : i32, i32, i32
  }
  func.func @transform_1(%arg0: i32, %arg1: i32) -> (i32, i32, i32) {
    %c0_i32 = arith.constant 0 : i32
    %c0_i32_0 = arith.constant 0 : i32
    %c0_i32_1 = arith.constant 0 : i32
    return %arg0, %c0_i32, %c0_i32_0 : i32, i32, i32
  }
  func.func @transform_2(%arg0: i32, %arg1: i32) -> (i32, i32, i32) {
    %c0_i32 = arith.constant 0 : i32
    %c0_i32_0 = arith.constant 0 : i32
    %c0_i32_1 = arith.constant 0 : i32
    return %arg0, %c0_i32, %c0_i32_0 : i32, i32, i32
  }
  func.func @transform_3(%arg0: i32, %arg1: i32) -> (i32, i32) {
    %c0_i32 = arith.constant 0 : i32
    %c0_i32_0 = arith.constant 0 : i32
    %c0_i32_1 = arith.constant 0 : i32
    return %c0_i32, %c0_i32_0 : i32, i32
  }
  func.func @transform_4(%arg0: i32, %arg1: i32) -> (i32, i32) {
    %c0_i32 = arith.constant 0 : i32
    %c0_i32_0 = arith.constant 0 : i32
    %c0_i32_1 = arith.constant 0 : i32
    return %c0_i32, %c0_i32_0 : i32, i32
  }
  func.func @transform_5(%arg0: i32, %arg1: i32) -> (i32, i32, i32) {
    %c0_i32 = arith.constant 0 : i32
    %c0_i32_0 = arith.constant 0 : i32
    return %arg0, %c0_i32, %arg1 : i32, i32, i32
  }
}

</mosaic_0001>

<llo_original>
// kernel: tpu_custom_call.1
$region0: #{tpu_custom_call.1}
  #allocation0 [shape = 'u32[]', space=smem, size = 0x4, offset = 0x4, fixed_abs, tag = 'smem constant byte address 0x4 - core index']
  #allocation1 [shape = 'u32[144,128]{1,0:T(1,128)}', space=vmem, size = 0x12000, scoped, tag = 'internal scratch']
  %s0 = inlined_call_operand.vmem [shape: bf16[2,4,256], index: 0, kind: input, shape index: {}]
  %s1 = inlined_call_operand.vmem [shape: bf16[2,4,128], index: 1, kind: input, shape index: {}]
  %s2 = inlined_call_operand.vmem [shape: f32[2,8,128], index: 2, kind: input, shape index: {}]
  %s3 = inlined_call_operand.vmem [shape: bf16[9,4], index: 3, kind: input, shape index: {}]
  %s4 = inlined_call_operand.vmem [shape: f32[9,1], index: 4, kind: input, shape index: {}]
  %s5 = inlined_call_operand.hbm [shape: f32[2,4,256], index: 5, kind: output, shape index: {}]
  %s6 = sld [smem:[#allocation0]]
  $region53: #{tpu_custom_call.1} parent=0
    _
  %s8 = ssub.s32 1, %s6
  %s9 = scalar_select 0, %s8, %s6
  $region1: #{tpu_custom_call.1} parent=0
    #allocation2 [shape = 'u8[8192]{0}', space=vmem, size = 0x2000, scoped, tag = 'output window, operand 0']
    #allocation3 [shape = 's32[2]{0}', space=sflag, size = 0x8, scoped, tag = 'scoped memory for tpu_custom_call.1']
    %10 = vsyncpa [#allocation3], 0
    %s11 = scalar_lea.sflag [#allocation3], 1
    %12 = vsyncpa %s11, 0
    loop: start=0, step=1, limit=4
    $region2: #{tpu_custom_call.1} parent=1 // loop_pre_header
      _
    $region3: #{tpu_custom_call.1} parent=1 // loop_header
      %s14 = sphi 0, %s18
      %p15 = scmp.ge.s32.totalorder %s14, 4
      %s21 = sphi 0, %s33
      %s22 = sphi 0, %s29
      %s23 = sphi 0, %s21
      %s24 = sphi 0, %s22
      %s25 = sphi 0, %s23
      %s26 = sphi 0, %s24
      %s38 = sphi 0, %s40
      %s41 = sphi 0, %s38
      %s42 = sphi 0, %s41
      %s58 = sphi 0, %s42
      %s64 = sphi 0, %s66
      %s67 = sphi 0, %s64
      %s68 = sphi 0, %s67
      %s84 = sphi 0, %s68
      %s90 = sphi 0, %s92
      %s93 = sphi 0, %s90
      %s94 = sphi 0, %s93
      %s110 = sphi 0, %s94
      %s114 = sphi 0, %s114
      %s116 = sphi 0, %s114
      %s117 = sphi 0, %s116
      %s131 = sphi 0, %s117
      %s135 = sphi 0, %s135
      %s137 = sphi 0, %s135
      %s138 = sphi 0, %s137
      %s152 = sphi 0, %s138
      %s160 = sphi 0, %s162
      %s163 = sphi 0, %s160
      %s164 = sphi 0, %s163
      %s180 = sphi 0, %s164
    $region4: #{tpu_custom_call.1} parent=1 // loop_header_branch
      %17 = sbr.rel (%p15) target = $region8
    $region5: #{tpu_custom_call.1} parent=1 // loop_body
      %s19 = ssub.s32 %s14, 1
      %s20 = ssub.s32 %s14, 2
      %s27 = sadd.s32 1, %s22
      %p28 = scmp.ge.s32.totalorder %s27, 1
      %s29 = scalar_select %p28, 0, %s27
      %s30 = sadd.s32 1, %s21
      %s31 = scalar_select %p28, %s30, %s21
      %p32 = scmp.ge.s32.totalorder %s31, 2
      %s33 = scalar_select %p32, 0, %s31
      %s34 = ssub.s32 %s21, %s33
      %s35 = ssub.s32 %s22, %s29
      %s36 = sor.u32 %s34, %s35
      %p37 = scmp.eq.s32.totalorder %s36, 0
      %s39 = sadd.s32 %s38, 1
      %s40 = scalar_select %p37, %s38, %s39
      %p43 = pneg %p37
      %p44 = scmp.eq.s32.totalorder %s14, 1
      %p45 = por %p43, %p44
      %p46 = scmp.ne.s32.totalorder %s38, %s41
      %p47 = scmp.eq.s32.totalorder %s14, 0
      %p48 = por %p46, %p47
      %p49 = scmp.ne.s32.totalorder %s38, %s41
      %p50 = scmp.eq.s32.totalorder %s19, 1
      %p51 = por %p49, %p50
      %p52 = scmp.ne.s32.totalorder %s41, %s42
      %p53 = scmp.eq.s32.totalorder %s19, 0
      %p54 = por %p52, %p53
      %p55 = scmp.ne.s32.totalorder %s41, %s42
      %p56 = scmp.eq.s32.totalorder %s20, 1
      %p57 = por %p55, %p56
      %p59 = scmp.ne.s32.totalorder %s42, %s58
      %p60 = scmp.eq.s32.totalorder %s20, 0
      %p61 = por %p59, %p60
      %s62 = ssub.s32 %s21, %s33
      %p63 = scmp.eq.s32.totalorder %s62, 0
      %s65 = sadd.s32 %s64, 1
      %s66 = scalar_select %p63, %s64, %s65
      %p69 = pneg %p63
      %p70 = scmp.eq.s32.totalorder %s14, 1
      %p71 = por %p69, %p70
      %p72 = scmp.ne.s32.totalorder %s64, %s67
      %p73 = scmp.eq.s32.totalorder %s14, 0
      %p74 = por %p72, %p73
      %p75 = scmp.ne.s32.totalorder %s64, %s67
      %p76 = scmp.eq.s32.totalorder %s19, 1
      %p77 = por %p75, %p76
      %p78 = scmp.ne.s32.totalorder %s67, %s68
      %p79 = scmp.eq.s32.totalorder %s19, 0
      %p80 = por %p78, %p79
      %p81 = scmp.ne.s32.totalorder %s67, %s68
      %p82 = scmp.eq.s32.totalorder %s20, 1
      %p83 = por %p81, %p82
      %p85 = scmp.ne.s32.totalorder %s68, %s84
      %p86 = scmp.eq.s32.totalorder %s20, 0
      %p87 = por %p85, %p86
      %s88 = ssub.s32 %s21, %s33
      %p89 = scmp.eq.s32.totalorder %s88, 0
      %s91 = sadd.s32 %s90, 1
      %s92 = scalar_select %p89, %s90, %s91
      %p95 = pneg %p89
      %p96 = scmp.eq.s32.totalorder %s14, 1
      %p97 = por %p95, %p96
      %p98 = scmp.ne.s32.totalorder %s90, %s93
      %p99 = scmp.eq.s32.totalorder %s14, 0
      %p100 = por %p98, %p99
      %p101 = scmp.ne.s32.totalorder %s90, %s93
      %p102 = scmp.eq.s32.totalorder %s19, 1
      %p103 = por %p101, %p102
      %p104 = scmp.ne.s32.totalorder %s93, %s94
      %p105 = scmp.eq.s32.totalorder %s19, 0
      %p106 = por %p104, %p105
      %p107 = scmp.ne.s32.totalorder %s93, %s94
      %p108 = scmp.eq.s32.totalorder %s20, 1
      %p109 = por %p107, %p108
      %p111 = scmp.ne.s32.totalorder %s94, %s110
      %p112 = scmp.eq.s32.totalorder %s20, 0
      %p113 = por %p111, %p112
      %s115 = sadd.s32 %s114, 1
      %p118 = scmp.eq.s32.totalorder %s14, 1
      %p119 = scmp.ne.s32.totalorder %s114, %s116
      %p120 = scmp.eq.s32.totalorder %s14, 0
      %p121 = por %p119, %p120
      %p122 = scmp.ne.s32.totalorder %s114, %s116
      %p123 = scmp.eq.s32.totalorder %s19, 1
      %p124 = por %p122, %p123
      %p125 = scmp.ne.s32.totalorder %s116, %s117
      %p126 = scmp.eq.s32.totalorder %s19, 0
      %p127 = por %p125, %p126
      %p128 = scmp.ne.s32.totalorder %s116, %s117
      %p129 = scmp.eq.s32.totalorder %s20, 1
      %p130 = por %p128, %p129
      %p132 = scmp.ne.s32.totalorder %s117, %s131
      %p133 = scmp.eq.s32.totalorder %s20, 0
      %p134 = por %p132, %p133
      %s136 = sadd.s32 %s135, 1
      %p139 = scmp.eq.s32.totalorder %s14, 1
      %p140 = scmp.ne.s32.totalorder %s135, %s137
      %p141 = scmp.eq.s32.totalorder %s14, 0
      %p142 = por %p140, %p141
      %p143 = scmp.ne.s32.totalorder %s135, %s137
      %p144 = scmp.eq.s32.totalorder %s19, 1
      %p145 = por %p143, %p144
      %p146 = scmp.ne.s32.totalorder %s137, %s138
      %p147 = scmp.eq.s32.totalorder %s19, 0
      %p148 = por %p146, %p147
      %p149 = scmp.ne.s32.totalorder %s137, %s138
      %p150 = scmp.eq.s32.totalorder %s20, 1
      %p151 = por %p149, %p150
      %p153 = scmp.ne.s32.totalorder %s138, %s152
      %p154 = scmp.eq.s32.totalorder %s20, 0
      %p155 = por %p153, %p154
      %s156 = ssub.s32 %s21, %s33
      %s157 = ssub.s32 %s22, %s29
      %s158 = sor.u32 %s156, %s157
      %p159 = scmp.eq.s32.totalorder %s158, 0
      %s161 = sadd.s32 %s160, 1
      %s162 = scalar_select %p159, %s160, %s161
      %p165 = pneg %p159
      %p166 = scmp.eq.s32.totalorder %s14, 1
      %p167 = por %p165, %p166
      %p168 = scmp.ne.s32.totalorder %s160, %s163
      %p169 = scmp.eq.s32.totalorder %s14, 0
      %p170 = por %p168, %p169
      %p171 = scmp.ne.s32.totalorder %s160, %s163
      %p172 = scmp.eq.s32.totalorder %s19, 1
      %p173 = por %p171, %p172
      %p174 = scmp.ne.s32.totalorder %s163, %s164
      %p175 = scmp.eq.s32.totalorder %s19, 0
      %p176 = por %p174, %p175
      %p177 = scmp.ne.s32.totalorder %s163, %s164
      %p178 = scmp.eq.s32.totalorder %s20, 1
      %p179 = por %p177, %p178
      %p181 = scmp.ne.s32.totalorder %s164, %s180
      %p182 = scmp.eq.s32.totalorder %s20, 0
      %p183 = por %p181, %p182
      %p184 = scmp.le.s32.totalorder 1, %s14
      %p185 = scmp.lt.s32.totalorder %s14, 3
      %p186 = pnand %p184, %p185
      %p187 = pneg %p186
      // Predicated region
      $region9: #{tpu_custom_call.1} parent=5 // pred_check
        _
      $region10: #{tpu_custom_call.1} parent=5 // pred_check_branch
        %189 = sbr.rel (%p186) target = $region12
      $region11: #{tpu_custom_call.1} parent=5 // pred_region
        %s190 = ssub.s32 %s14, 1
        // Predicated region
        $region13: #{tpu_custom_call.1} parent=11 // pred_check
          %p191 = pneg %p127
        $region14: #{tpu_custom_call.1} parent=11 // pred_check_branch
          %193 = sbr.rel (%p191) target = $region16
        $region15: #{tpu_custom_call.1} parent=11 // pred_region
          _
        $region16: #{tpu_custom_call.1} parent=11 // pred_fallthru
          _
        // Predicated region
        $region17: #{tpu_custom_call.1} parent=11 // pred_check
          %p194 = pneg %p148
        $region18: #{tpu_custom_call.1} parent=11 // pred_check_branch
          %196 = sbr.rel (%p194) target = $region20
        $region19: #{tpu_custom_call.1} parent=11 // pred_region
          _
        $region20: #{tpu_custom_call.1} parent=11 // pred_fallthru
          _
      $region12: #{tpu_custom_call.1} parent=5 // pred_fallthru
        _
      %p197 = scmp.lt.s32.totalorder %s14, 2
      // Predicated region
      $region21: #{tpu_custom_call.1} parent=5 // pred_check
        %p198 = pneg %p197
      $region22: #{tpu_custom_call.1} parent=5 // pred_check_branch
        %200 = sbr.rel (%p198) target = $region24
      $region23: #{tpu_custom_call.1} parent=5 // pred_region
        // Predicated region
        $region25: #{tpu_custom_call.1} parent=23 // pred_check
          %p201 = pneg %p48
        $region26: #{tpu_custom_call.1} parent=23 // pred_check_branch
          %203 = sbr.rel (%p201) target = $region28
        $region27: #{tpu_custom_call.1} parent=23 // pred_region
          %s204 = smul.u32 2, %s22
          %p205 = scmp.lt.s32.totalorder %s21, 1
          %s206 = scalar_select %p205, %s21, 1
          %p207 = scmp.lt.s32.totalorder %s204, 1
          %s208 = scalar_select %p207, %s204, 1
          %s209 = smul.addr %s206, 2
          %s210 = sadd.s32 %s208, %s209
          %s211 = smul.addr %s210, 2
          %s212 = scalar_lea.vmem %s0, %s211
          %s213 = smul.u32 2, %s22
        $region28: #{tpu_custom_call.1} parent=23 // pred_fallthru
          _
        // Predicated region
        $region29: #{tpu_custom_call.1} parent=23 // pred_check
          %p214 = pneg %p74
        $region30: #{tpu_custom_call.1} parent=23 // pred_check_branch
          %216 = sbr.rel (%p214) target = $region32
        $region31: #{tpu_custom_call.1} parent=23 // pred_region
          %p217 = scmp.lt.s32.totalorder %s21, 1
          %s218 = scalar_select %p217, %s21, 1
          %s219 = smul.addr %s218, 2
          %s220 = scalar_lea.vmem %s1, %s219
        $region32: #{tpu_custom_call.1} parent=23 // pred_fallthru
          _
        // Predicated region
        $region33: #{tpu_custom_call.1} parent=23 // pred_check
          %p221 = pneg %p100
        $region34: #{tpu_custom_call.1} parent=23 // pred_check_branch
          %223 = sbr.rel (%p221) target = $region36
        $region35: #{tpu_custom_call.1} parent=23 // pred_region
          %p224 = scmp.lt.s32.totalorder %s21, 1
          %s225 = scalar_select %p224, %s21, 1
          %s226 = smul.addr %s225, 8
          %s227 = scalar_lea.vmem %s2, %s226
        $region36: #{tpu_custom_call.1} parent=23 // pred_fallthru
          _
      $region24: #{tpu_custom_call.1} parent=5 // pred_fallthru
        _
      %p228 = scmp.le.s32.totalorder 1, %s14
      %p229 = scmp.lt.s32.totalorder %s14, 3
      %p230 = pnand %p228, %p229
      %p231 = pneg %p230
      // Predicated region
      $region37: #{tpu_custom_call.1} parent=5 // pred_check
        _
      $region38: #{tpu_custom_call.1} parent=5 // pred_check_branch
        %233 = sbr.rel (%p230) target = $region40
      $region39: #{tpu_custom_call.1} parent=5 // pred_region
        %s234 = ssub.s32 %s14, 1
        %s235 = smul.u32 2, %s24
        %p236 = scmp.lt.s32.totalorder %s23, 1
        %s237 = scalar_select %p236, %s23, 1
        %p238 = scmp.lt.s32.totalorder %s235, 1
        %s239 = scalar_select %p238, %s235, 1
        %s240 = smul.addr %s237, 2
        %s241 = sadd.s32 %s239, %s240
        %s242 = smul.addr %s241, 2
        %s243 = scalar_lea.vmem %s0, %s242
        %p244 = pneg %p54
        %p245 = pneg %p51
        %p246 = scmp.lt.s32.totalorder %s23, 1
        %s247 = scalar_select %p246, %s23, 1
        %s248 = smul.addr %s247, 2
        %s249 = scalar_lea.vmem %s1, %s248
        %p250 = pneg %p80
        %p251 = pneg %p77
        %p252 = scmp.lt.s32.totalorder %s23, 1
        %s253 = scalar_select %p252, %s23, 1
        %s254 = smul.addr %s253, 8
        %s255 = scalar_lea.vmem %s2, %s254
        %p256 = pneg %p106
        %p257 = pneg %p103
        %p258 = pneg %p127
        %p259 = pneg %p124
        %p260 = pneg %p148
        %p261 = pneg %p145
        %p262 = pneg %p176
        %p263 = pneg %p173
        %s264 = sand.u32 %s163, 1
        %s265 = scalar_lea.sflag [#allocation3], %s264
        %s266 = sand.u32 %s163, 1
        %s267 = smul.addr %s266, 8
        %s268 = scalar_lea.vmem [#allocation2], %s267
        %s269 = smul.u32 2, %s24
        %p270 = scmp.lt.s32.totalorder %s23, 1
        %s271 = scalar_select %p270, %s23, 1
        %p272 = scmp.lt.s32.totalorder %s269, 1
        %s273 = scalar_select %p272, %s269, 1
        %s274 = smul.addr %s271, 2
        %s275 = sadd.s32 %s273, %s274
        %s276 = smul.addr %s275, 2
        %s277 = scalar_lea.vmem %s0, %s276
        %s278 = smul.u32 2, %s24
        %p279 = scmp.lt.s32.totalorder %s23, 1
        %s280 = scalar_select %p279, %s23, 1
        %s281 = smul.addr %s280, 2
        %s282 = scalar_lea.vmem %s1, %s281
        %p283 = scmp.lt.s32.totalorder %s23, 1
        %s284 = scalar_select %p283, %s23, 1
        %s285 = smul.addr %s284, 8
        %s286 = scalar_lea.vmem %s2, %s285
        %s287 = smul.u32 2, %s24
        %v289 = vld [vmem:[%s277] sm:$0xf]
        %v290 = vld [vmem:[%s282] sm:$0x3]
        %v291 = vld [vmem:[%s286] sm:$0xff]
        %v292 = vld [vmem:[%s3] sm:$0xf]
        %v293 = vld [vmem:[%s3 + $0x4] sm:$0x1]
        %v294 = vld [vmem:[%s4] sm:$0xff]
        %v295 = vld [vmem:[%s4 + $0x8] sm:$0x1]
        %297 = vset.pattern.permute.xlu0 0
        %298 = vperm.xlu0 %297, %v294
        %v299 = vpop.permute.xlu0 %298
        %302 = vset.pattern.permute.xlu0 0
        %303 = vperm.xlu0 %302, %v295
        %v304 = vpop.permute.xlu0 %303
        %v308 = vunpack.c.l.b16 %v292
        %v309 = vunpack.c.l.b16 %v293
        %v310 = vpack.c.b16 %v309, %v308
        %v313 = vunpack.c.l.s4 1983009808
        %v314 = vunpack.c.0.s8 %v313
        %v315 = vlaneseq
        %v316 = vshrl.u32 %v315, 7
        %v317 = vsub.s32 %v314, %v316
        %v318 = vrot.slane %v289, %v317
        %v319 = vcombine.high %v318, %v318
        %vm320 = vcmask 31744
        %v322 = vsel %vm320, %v310, 0
        %vm324 = vcmask 1041408
        %v326 = vsel %vm324, %v318, 0
        %v329 = vsel %vm324, %v319, 0
        %331 = vmatprep.subr.bf16.mxu0 0
        %332 = vmatpush1.bf16.msra.mxu0 0
        %333 = vmatprep.subr.bf16.mxu0 0
        %334 = vmatpush1.bf16.msra.mxu0 0
        %335 = vmatprep.subr.bf16.mxu0 0
        %336 = vmatpush1.bf16.msra.mxu0 0
        %337 = vmatprep.subr.bf16.mxu0 0
        %338 = vmatpush1.bf16.msra.mxu0 0
        %339 = vmatprep.subr.bf16.mxu0 0
        %340 = vmatpush1.bf16.msra.mxu0 0
        %341 = vmatprep.subr.bf16.mxu0 0
        %342 = vmatpush1.bf16.msra.mxu0 0
        %343 = vmatprep.subr.bf16.mxu0 0
        %344 = vmatpush1.bf16.msra.mxu0 0
        %345 = vmatprep.subr.bf16.mxu0 %v329
        %346 = vmatpush1.bf16.msra.mxu0 %v326
        %347 = vmatprep.subr.bf16.mxu0 0
        %348 = vmatpush2.bf16.msra.mxu0 0
        %349 = vmatprep.subr.bf16.mxu0 0
        %350 = vmatpush2.bf16.msra.mxu0 0
        %351 = vmatprep.subr.bf16.mxu0 0
        %352 = vmatpush2.bf16.msra.mxu0 0
        %353 = vmatprep.subr.bf16.mxu0 0
        %354 = vmatpush2.bf16.msra.mxu0 0
        %355 = vmatprep.subr.bf16.mxu0 0
        %356 = vmatpush2.bf16.msra.mxu0 0
        %357 = vmatprep.subr.bf16.mxu0 0
        %358 = vmatpush2.bf16.msra.mxu0 0
        %359 = vmatprep.subr.bf16.mxu0 0
        %360 = vmatpush2.bf16.msra.mxu0 0
        %361 = vmatprep.subr.bf16.mxu0 0
        %362 = vmatpush2.bf16.msra.mxu0 0
        %363 = vmatprep.mubr.bf16.mxu0 0
        %364 = vmatmul.mubr.bf16.gmra.mxu0 %v322
        %v365 = vpop.f32.mrf.mxu0
        %v366 = vadd.f32 %v299, %v365
        %v367 = vpop.f32.mrf.mxu0
        %v368 = vadd.f32 %v299, %v367
        %v369 = vpop.f32.mrf.mxu0
        %v370 = vadd.f32 %v304, %v369
        %v371 = vpop.f32.mrf.mxu0
        %v372 = vadd.f32 %v304, %v371
        %373 = vdwg.mxu0
        %v374 = vxor.u32 %v370, 2147483648
        %v375 = vxor.u32 %v372, 2147483648
        %v376 = vmul.f32 %v374, 1.442695
        %v377 = vpow.pop %v376
        %v378 = vmul.f32 %v375, 1.442695
        %v379 = vpow.pop %v378
        %v380 = vadd.f32 %v377, 1.0
        %v381 = vadd.f32 %v379, 1.0
        %v382 = vrcp.pop %v380
        %v383 = vmul.f32 1.0, %v382
        %v384 = vrcp.pop %v381
        %v385 = vmul.f32 1.0, %v384
        %386 = vxpose.xlu0.b32.start [1/16] %v366, 128
        %387 = vxpose.xlu0.b32.cont [2/16] 0.0, 128
        %388 = vxpose.xlu0.b32.cont [3/16] 0.0, 128
        %389 = vxpose.xlu0.b32.cont [4/16] 0.0, 128
        %390 = vxpose.xlu0.b32.cont [5/16] 0.0, 128
        %391 = vxpose.xlu0.b32.cont [6/16] 0.0, 128
        %392 = vxpose.xlu0.b32.cont [7/16] 0.0, 128
        %393 = vxpose.xlu0.b32.cont [8/16] 0.0, 128
        %394 = vxpose.xlu0.b32.cont [9/16] 0.0, 128
        %395 = vxpose.xlu0.b32.cont [10/16] 0.0, 128
        %396 = vxpose.xlu0.b32.cont [11/16] 0.0, 128
        %397 = vxpose.xlu0.b32.cont [12/16] 0.0, 128
        %398 = vxpose.xlu0.b32.cont [13/16] 0.0, 128
        %399 = vxpose.xlu0.b32.cont [14/16] 0.0, 128
        %400 = vxpose.xlu0.b32.cont [15/16] 0.0, 128
        %401 = vxpose.xlu0.b32.end [16/16] 0.0, 128
        %v402 = vpop.trf.xlu0
        %v403 = vpop.trf.xlu0
        %v404 = vpop.trf.xlu0
        %v405 = vpop.trf.xlu0
        %v406 = vpop.trf.xlu0
        %v407 = vpop.trf.xlu0
        %v408 = vpop.trf.xlu0
        %v409 = vpop.trf.xlu0
        %v410 = vpop.trf.xlu0
        %v411 = vpop.trf.xlu0
        %v412 = vpop.trf.xlu0
        %v413 = vpop.trf.xlu0
        %v414 = vpop.trf.xlu0
        %v415 = vpop.trf.xlu0
        %v416 = vpop.trf.xlu0
        %v417 = vpop.trf.xlu0
        %418 = vxpose.xlu0.b32.start [1/16] %v368, 128
        %419 = vxpose.xlu0.b32.cont [2/16] 0.0, 128
        %420 = vxpose.xlu0.b32.cont [3/16] 0.0, 128
        %421 = vxpose.xlu0.b32.cont [4/16] 0.0, 128
        %422 = vxpose.xlu0.b32.cont [5/16] 0.0, 128
        %423 = vxpose.xlu0.b32.cont [6/16] 0.0, 128
        %424 = vxpose.xlu0.b32.cont [7/16] 0.0, 128
        %425 = vxpose.xlu0.b32.cont [8/16] 0.0, 128
        %426 = vxpose.xlu0.b32.cont [9/16] 0.0, 128
        %427 = vxpose.xlu0.b32.cont [10/16] 0.0, 128
        %428 = vxpose.xlu0.b32.cont [11/16] 0.0, 128
        %429 = vxpose.xlu0.b32.cont [12/16] 0.0, 128
        %430 = vxpose.xlu0.b32.cont [13/16] 0.0, 128
        %431 = vxpose.xlu0.b32.cont [14/16] 0.0, 128
        %432 = vxpose.xlu0.b32.cont [15/16] 0.0, 128
        %433 = vxpose.xlu0.b32.end [16/16] 0.0, 128
        %v434 = vpop.trf.xlu0
        %v435 = vpop.trf.xlu0
        %v436 = vpop.trf.xlu0
        %v437 = vpop.trf.xlu0
        %v438 = vpop.trf.xlu0
        %v439 = vpop.trf.xlu0
        %v440 = vpop.trf.xlu0
        %v441 = vpop.trf.xlu0
        %v442 = vpop.trf.xlu0
        %v443 = vpop.trf.xlu0
        %v444 = vpop.trf.xlu0
        %v445 = vpop.trf.xlu0
        %v446 = vpop.trf.xlu0
        %v447 = vpop.trf.xlu0
        %v448 = vpop.trf.xlu0
        %v449 = vpop.trf.xlu0
        %vm450 = vcmask 64512
        %v452 = vsel %vm450, %v402, 0
        %v455 = vsel %vm450, %v403, 0
        %v458 = vsel %vm450, %v404, 0
        %v461 = vsel %vm450, %v405, 0
        %v464 = vsel %vm450, %v406, 0
        %v467 = vsel %vm450, %v407, 0
        %v470 = vsel %vm450, %v408, 0
        %v473 = vsel %vm450, %v409, 0
        %v476 = vsel %vm450, %v410, 0
        %v479 = vsel %vm450, %v411, 0
        %v482 = vsel %vm450, %v412, 0
        %v485 = vsel %vm450, %v413, 0
        %v488 = vsel %vm450, %v414, 0
        %v491 = vsel %vm450, %v415, 0
        %v494 = vsel %vm450, %v416, 0
        %v497 = vsel %vm450, %v417, 0
        %v500 = vsel %vm450, %v434, 0
        %v503 = vsel %vm450, %v435, 0
        %v506 = vsel %vm450, %v436, 0
        %v509 = vsel %vm450, %v437, 0
        %v512 = vsel %vm450, %v438, 0
        %v515 = vsel %vm450, %v439, 0
        %v518 = vsel %vm450, %v440, 0
        %v521 = vsel %vm450, %v441, 0
        %v524 = vsel %vm450, %v442, 0
        %v527 = vsel %vm450, %v443, 0
        %v530 = vsel %vm450, %v444, 0
        %v533 = vsel %vm450, %v445, 0
        %v536 = vsel %vm450, %v446, 0
        %v539 = vsel %vm450, %v447, 0
        %v542 = vsel %vm450, %v448, 0
        %v545 = vsel %vm450, %v449, 0
        %547 = vmatprep.subr.mxu0 0.0
        %548 = vmatpush1.msra.mxu0 0.0
        %549 = vmatprep.subr.mxu0 0.0
        %550 = vmatpush1.msra.mxu0 0.0
        %551 = vmatprep.subr.mxu0 0.0
        %552 = vmatpush1.msra.mxu0 0.0
        %553 = vmatprep.subr.mxu0 0.0
        %554 = vmatpush1.msra.mxu0 0.0
        %555 = vmatprep.subr.mxu0 0.0
        %556 = vmatpush1.msra.mxu0 0.0
        %557 = vmatprep.subr.mxu0 0.0
        %558 = vmatpush1.msra.mxu0 0.0
        %559 = vmatprep.subr.mxu0 0.0
        %560 = vmatpush1.msra.mxu0 0.0
        %561 = vmatprep.subr.mxu0 0.0
        %562 = vmatpush1.msra.mxu0 0.0
        %563 = vmatprep.subr.mxu0 0.0
        %564 = vmatpush1.msra.mxu0 0.0
        %565 = vmatprep.subr.mxu0 0.0
        %566 = vmatpush1.msra.mxu0 0.0
        %567 = vmatprep.subr.mxu0 0.0
        %568 = vmatpush1.msra.mxu0 0.0
        %569 = vmatprep.subr.mxu0 0.0
        %570 = vmatpush1.msra.mxu0 0.0
        %571 = vmatprep.subr.mxu0 0.0
        %572 = vmatpush1.msra.mxu0 0.0
        %573 = vmatprep.subr.mxu0 0.0
        %574 = vmatpush1.msra.mxu0 0.0
        %575 = vmatprep.subr.mxu0 0.0
        %576 = vmatpush1.msra.mxu0 0.0
        %577 = vmatprep.subr.mxu0 0.0
        %578 = vmatpush1.msra.mxu0 %v291
        %579 = vmatprep.subr.mxu0 0.0
        %580 = vmatpush2.msra.mxu0 0.0
        %581 = vmatprep.subr.mxu0 0.0
        %582 = vmatpush2.msra.mxu0 0.0
        %583 = vmatprep.subr.mxu0 0.0
        %584 = vmatpush2.msra.mxu0 0.0
        %585 = vmatprep.subr.mxu0 0.0
        %586 = vmatpush2.msra.mxu0 0.0
        %587 = vmatprep.subr.mxu0 0.0
        %588 = vmatpush2.msra.mxu0 0.0
        %589 = vmatprep.subr.mxu0 0.0
        %590 = vmatpush2.msra.mxu0 0.0
        %591 = vmatprep.subr.mxu0 0.0
        %592 = vmatpush2.msra.mxu0 0.0
        %593 = vmatprep.subr.mxu0 0.0
        %594 = vmatpush2.msra.mxu0 0.0
        %595 = vmatprep.subr.mxu0 0.0
        %596 = vmatpush2.msra.mxu0 0.0
        %597 = vmatprep.subr.mxu0 0.0
        %598 = vmatpush2.msra.mxu0 0.0
        %599 = vmatprep.subr.mxu0 0.0
        %600 = vmatpush2.msra.mxu0 0.0
        %601 = vmatprep.subr.mxu0 0.0
        %602 = vmatpush2.msra.mxu0 0.0
        %603 = vmatprep.subr.mxu0 0.0
        %604 = vmatpush2.msra.mxu0 0.0
        %605 = vmatprep.subr.mxu0 0.0
        %606 = vmatpush2.msra.mxu0 0.0
        %607 = vmatprep.subr.mxu0 0.0
        %608 = vmatpush2.msra.mxu0 0.0
        %609 = vmatprep.subr.mxu0 0.0
        %610 = vmatpush2.msra.mxu0 0.0
        %611 = vmatprep.mubr.f32.mxu0 0.0
        %612 = vmatmul.mubr.f32.gmra.mxu0 %v452
        %v613 = vpop.f32.mrf.mxu0
        %v614 = vadd.f32 0.0, %v613
        %v615 = vpop.f32.mrf.mxu0
        %616 = vmatprep.mubr.f32.mxu0 0.0
        %617 = vmatmul.mubr.f32.gmra.mxu0 %v455
        %v618 = vpop.f32.mrf.mxu0
        %v619 = vadd.f32 0.0, %v618
        %v620 = vpop.f32.mrf.mxu0
        %621 = vmatprep.mubr.f32.mxu0 0.0
        %622 = vmatmul.mubr.f32.gmra.mxu0 %v458
        %v623 = vpop.f32.mrf.mxu0
        %v624 = vadd.f32 0.0, %v623
        %v625 = vpop.f32.mrf.mxu0
        %626 = vmatprep.mubr.f32.mxu0 0.0
        %627 = vmatmul.mubr.f32.gmra.mxu0 %v461
        %v628 = vpop.f32.mrf.mxu0
        %v629 = vadd.f32 0.0, %v628
        %v630 = vpop.f32.mrf.mxu0
        %631 = vmatprep.mubr.f32.mxu0 0.0
        %632 = vmatmul.mubr.f32.gmra.mxu0 %v464
        %v633 = vpop.f32.mrf.mxu0
        %v634 = vadd.f32 0.0, %v633
        %v635 = vpop.f32.mrf.mxu0
        %636 = vmatprep.mubr.f32.mxu0 0.0
        %637 = vmatmul.mubr.f32.gmra.mxu0 %v467
        %v638 = vpop.f32.mrf.mxu0
        %v639 = vadd.f32 0.0, %v638
        %v640 = vpop.f32.mrf.mxu0
        %641 = vmatprep.mubr.f32.mxu0 0.0
        %642 = vmatmul.mubr.f32.gmra.mxu0 %v470
        %v643 = vpop.f32.mrf.mxu0
        %v644 = vadd.f32 0.0, %v643
        %v645 = vpop.f32.mrf.mxu0
        %646 = vmatprep.mubr.f32.mxu0 0.0
        %647 = vmatmul.mubr.f32.gmra.mxu0 %v473
        %v648 = vpop.f32.mrf.mxu0
        %v649 = vadd.f32 0.0, %v648
        %v650 = vpop.f32.mrf.mxu0
        %651 = vmatprep.mubr.f32.mxu0 0.0
        %652 = vmatmul.mubr.f32.gmra.mxu0 %v476
        %v653 = vpop.f32.mrf.mxu0
        %v654 = vadd.f32 0.0, %v653
        %v655 = vpop.f32.mrf.mxu0
        %656 = vmatprep.mubr.f32.mxu0 0.0
        %657 = vmatmul.mubr.f32.gmra.mxu0 %v479
        %v658 = vpop.f32.mrf.mxu0
        %v659 = vadd.f32 0.0, %v658
        %v660 = vpop.f32.mrf.mxu0
        %661 = vmatprep.mubr.f32.mxu0 0.0
        %662 = vmatmul.mubr.f32.gmra.mxu0 %v482
        %v663 = vpop.f32.mrf.mxu0
        %v664 = vadd.f32 0.0, %v663
        %v665 = vpop.f32.mrf.mxu0
        %666 = vmatprep.mubr.f32.mxu0 0.0
        %667 = vmatmul.mubr.f32.gmra.mxu0 %v485
        %v668 = vpop.f32.mrf.mxu0
        %v669 = vadd.f32 0.0, %v668
        %v670 = vpop.f32.mrf.mxu0
        %671 = vmatprep.mubr.f32.mxu0 0.0
        %672 = vmatmul.mubr.f32.gmra.mxu0 %v488
        %v673 = vpop.f32.mrf.mxu0
        %v674 = vadd.f32 0.0, %v673
        %v675 = vpop.f32.mrf.mxu0
        %676 = vmatprep.mubr.f32.mxu0 0.0
        %677 = vmatmul.mubr.f32.gmra.mxu0 %v491
        %v678 = vpop.f32.mrf.mxu0
        %v679 = vadd.f32 0.0, %v678
        %v680 = vpop.f32.mrf.mxu0
        %681 = vmatprep.mubr.f32.mxu0 0.0
        %682 = vmatmul.mubr.f32.gmra.mxu0 %v494
        %v683 = vpop.f32.mrf.mxu0
        %v684 = vadd.f32 0.0, %v683
        %v685 = vpop.f32.mrf.mxu0
        %686 = vmatprep.mubr.f32.mxu0 0.0
        %687 = vmatmul.mubr.f32.gmra.mxu0 %v497
        %v688 = vpop.f32.mrf.mxu0
        %v689 = vadd.f32 0.0, %v688
        %v690 = vpop.f32.mrf.mxu0
        %691 = vmatprep.mubr.f32.mxu0 0.0
        %692 = vmatmul.mubr.f32.gmra.mxu0 %v500
        %v693 = vpop.f32.mrf.mxu0
        %v694 = vadd.f32 0.0, %v693
        %v695 = vpop.f32.mrf.mxu0
        %696 = vmatprep.mubr.f32.mxu0 0.0
        %697 = vmatmul.mubr.f32.gmra.mxu0 %v503
        %v698 = vpop.f32.mrf.mxu0
        %v699 = vadd.f32 0.0, %v698
        %v700 = vpop.f32.mrf.mxu0
        %701 = vmatprep.mubr.f32.mxu0 0.0
        %702 = vmatmul.mubr.f32.gmra.mxu0 %v506
        %v703 = vpop.f32.mrf.mxu0
        %v704 = vadd.f32 0.0, %v703
        %v705 = vpop.f32.mrf.mxu0
        %706 = vmatprep.mubr.f32.mxu0 0.0
        %707 = vmatmul.mubr.f32.gmra.mxu0 %v509
        %v708 = vpop.f32.mrf.mxu0
        %v709 = vadd.f32 0.0, %v708
        %v710 = vpop.f32.mrf.mxu0
        %711 = vmatprep.mubr.f32.mxu0 0.0
        %712 = vmatmul.mubr.f32.gmra.mxu0 %v512
        %v713 = vpop.f32.mrf.mxu0
        %v714 = vadd.f32 0.0, %v713
        %v715 = vpop.f32.mrf.mxu0
        %716 = vmatprep.mubr.f32.mxu0 0.0
        %717 = vmatmul.mubr.f32.gmra.mxu0 %v515
        %v718 = vpop.f32.mrf.mxu0
        %v719 = vadd.f32 0.0, %v718
        %v720 = vpop.f32.mrf.mxu0
        %721 = vmatprep.mubr.f32.mxu0 0.0
        %722 = vmatmul.mubr.f32.gmra.mxu0 %v518
        %v723 = vpop.f32.mrf.mxu0
        %v724 = vadd.f32 0.0, %v723
        %v725 = vpop.f32.mrf.mxu0
        %726 = vmatprep.mubr.f32.mxu0 0.0
        %727 = vmatmul.mubr.f32.gmra.mxu0 %v521
        %v728 = vpop.f32.mrf.mxu0
        %v729 = vadd.f32 0.0, %v728
        %v730 = vpop.f32.mrf.mxu0
        %731 = vmatprep.mubr.f32.mxu0 0.0
        %732 = vmatmul.mubr.f32.gmra.mxu0 %v524
        %v733 = vpop.f32.mrf.mxu0
        %v734 = vadd.f32 0.0, %v733
        %v735 = vpop.f32.mrf.mxu0
        %736 = vmatprep.mubr.f32.mxu0 0.0
        %737 = vmatmul.mubr.f32.gmra.mxu0 %v527
        %v738 = vpop.f32.mrf.mxu0
        %v739 = vadd.f32 0.0, %v738
        %v740 = vpop.f32.mrf.mxu0
        %741 = vmatprep.mubr.f32.mxu0 0.0
        %742 = vmatmul.mubr.f32.gmra.mxu0 %v530
        %v743 = vpop.f32.mrf.mxu0
        %v744 = vadd.f32 0.0, %v743
        %v745 = vpop.f32.mrf.mxu0
        %746 = vmatprep.mubr.f32.mxu0 0.0
        %747 = vmatmul.mubr.f32.gmra.mxu0 %v533
        %v748 = vpop.f32.mrf.mxu0
        %v749 = vadd.f32 0.0, %v748
        %v750 = vpop.f32.mrf.mxu0
        %751 = vmatprep.mubr.f32.mxu0 0.0
        %752 = vmatmul.mubr.f32.gmra.mxu0 %v536
        %v753 = vpop.f32.mrf.mxu0
        %v754 = vadd.f32 0.0, %v753
        %v755 = vpop.f32.mrf.mxu0
        %756 = vmatprep.mubr.f32.mxu0 0.0
        %757 = vmatmul.mubr.f32.gmra.mxu0 %v539
        %v758 = vpop.f32.mrf.mxu0
        %v759 = vadd.f32 0.0, %v758
        %v760 = vpop.f32.mrf.mxu0
        %761 = vmatprep.mubr.f32.mxu0 0.0
        %762 = vmatmul.mubr.f32.gmra.mxu0 %v542
        %v763 = vpop.f32.mrf.mxu0
        %v764 = vadd.f32 0.0, %v763
        %v765 = vpop.f32.mrf.mxu0
        %766 = vmatprep.mubr.f32.mxu0 0.0
        %767 = vmatmul.mubr.f32.gmra.mxu0 %v545
        %v768 = vpop.f32.mrf.mxu0
        %v769 = vadd.f32 0.0, %v768
        %v770 = vpop.f32.mrf.mxu0
        %771 = vdwg.mxu0
        %v772 = vlaneseq
        %v773 = vand.u32 %v772, 127
        %vm774 = vcmp.lt.s32.totalorder %v773, 110
        %v775 = vsel %vm774, %v614, -1e+30
        %v776 = vsel %vm774, %v619, -1e+30
        %v777 = vsel %vm774, %v624, -1e+30
        %v778 = vsel %vm774, %v629, -1e+30
        %v779 = vsel %vm774, %v634, -1e+30
        %v780 = vsel %vm774, %v639, -1e+30
        %v781 = vsel %vm774, %v644, -1e+30
        %v782 = vsel %vm774, %v649, -1e+30
        %v783 = vsel %vm774, %v654, -1e+30
        %v784 = vsel %vm774, %v659, -1e+30
        %v785 = vsel %vm774, %v664, -1e+30
        %v786 = vsel %vm774, %v669, -1e+30
        %v787 = vsel %vm774, %v674, -1e+30
        %v788 = vsel %vm774, %v679, -1e+30
        %v789 = vsel %vm774, %v684, -1e+30
        %v790 = vsel %vm774, %v689, -1e+30
        %v791 = vsel %vm774, %v694, -1e+30
        %v792 = vsel %vm774, %v699, -1e+30
        %v793 = vsel %vm774, %v704, -1e+30
        %v794 = vsel %vm774, %v709, -1e+30
        %v795 = vsel %vm774, %v714, -1e+30
        %v796 = vsel %vm774, %v719, -1e+30
        %v797 = vsel %vm774, %v724, -1e+30
        %v798 = vsel %vm774, %v729, -1e+30
        %v799 = vsel %vm774, %v734, -1e+30
        %v800 = vsel %vm774, %v739, -1e+30
        %v801 = vsel %vm774, %v744, -1e+30
        %v802 = vsel %vm774, %v749, -1e+30
        %v803 = vsel %vm774, %v754, -1e+30
        %v804 = vsel %vm774, %v759, -1e+30
        %v805 = vsel %vm774, %v764, -1e+30
        %v806 = vsel %vm774, %v769, -1e+30
        %807 = vmax.xlane.f32.xlu0 %v775
        %v808 = vpop.xlane.xlu0 %807
        %809 = vmax.xlane.f32.xlu0 %v776
        %v810 = vpop.xlane.xlu0 %809
        %811 = vmax.xlane.f32.xlu0 %v777
        %v812 = vpop.xlane.xlu0 %811
        %813 = vmax.xlane.f32.xlu0 %v778
        %v814 = vpop.xlane.xlu0 %813
        %815 = vmax.xlane.f32.xlu0 %v779
        %v816 = vpop.xlane.xlu0 %815
        %817 = vmax.xlane.f32.xlu0 %v780
        %v818 = vpop.xlane.xlu0 %817
        %819 = vmax.xlane.f32.xlu0 %v781
        %v820 = vpop.xlane.xlu0 %819
        %821 = vmax.xlane.f32.xlu0 %v782
        %v822 = vpop.xlane.xlu0 %821
        %823 = vmax.xlane.f32.xlu0 %v783
        %v824 = vpop.xlane.xlu0 %823
        %825 = vmax.xlane.f32.xlu0 %v784
        %v826 = vpop.xlane.xlu0 %825
        %827 = vmax.xlane.f32.xlu0 %v785
        %v828 = vpop.xlane.xlu0 %827
        %829 = vmax.xlane.f32.xlu0 %v786
        %v830 = vpop.xlane.xlu0 %829
        %831 = vmax.xlane.f32.xlu0 %v787
        %v832 = vpop.xlane.xlu0 %831
        %833 = vmax.xlane.f32.xlu0 %v788
        %v834 = vpop.xlane.xlu0 %833
        %835 = vmax.xlane.f32.xlu0 %v789
        %v836 = vpop.xlane.xlu0 %835
        %837 = vmax.xlane.f32.xlu0 %v790
        %v838 = vpop.xlane.xlu0 %837
        %839 = vmax.xlane.f32.xlu0 %v791
        %v840 = vpop.xlane.xlu0 %839
        %841 = vmax.xlane.f32.xlu0 %v792
        %v842 = vpop.xlane.xlu0 %841
        %843 = vmax.xlane.f32.xlu0 %v793
        %v844 = vpop.xlane.xlu0 %843
        %845 = vmax.xlane.f32.xlu0 %v794
        %v846 = vpop.xlane.xlu0 %845
        %847 = vmax.xlane.f32.xlu0 %v795
        %v848 = vpop.xlane.xlu0 %847
        %849 = vmax.xlane.f32.xlu0 %v796
        %v850 = vpop.xlane.xlu0 %849
        %851 = vmax.xlane.f32.xlu0 %v797
        %v852 = vpop.xlane.xlu0 %851
        %853 = vmax.xlane.f32.xlu0 %v798
        %v854 = vpop.xlane.xlu0 %853
        %855 = vmax.xlane.f32.xlu0 %v799
        %v856 = vpop.xlane.xlu0 %855
        %857 = vmax.xlane.f32.xlu0 %v800
        %v858 = vpop.xlane.xlu0 %857
        %859 = vmax.xlane.f32.xlu0 %v801
        %v860 = vpop.xlane.xlu0 %859
        %861 = vmax.xlane.f32.xlu0 %v802
        %v862 = vpop.xlane.xlu0 %861
        %863 = vmax.xlane.f32.xlu0 %v803
        %v864 = vpop.xlane.xlu0 %863
        %865 = vmax.xlane.f32.xlu0 %v804
        %v866 = vpop.xlane.xlu0 %865
        %867 = vmax.xlane.f32.xlu0 %v805
        %v868 = vpop.xlane.xlu0 %867
        %869 = vmax.xlane.f32.xlu0 %v806
        %v870 = vpop.xlane.xlu0 %869
        %v871 = vsub.f32 %v775, %v808
        %v872 = vsub.f32 %v776, %v810
        %v873 = vsub.f32 %v777, %v812
        %v874 = vsub.f32 %v778, %v814
        %v875 = vsub.f32 %v779, %v816
        %v876 = vsub.f32 %v780, %v818
        %v877 = vsub.f32 %v781, %v820
        %v878 = vsub.f32 %v782, %v822
        %v879 = vsub.f32 %v783, %v824
        %v880 = vsub.f32 %v784, %v826
        %v881 = vsub.f32 %v785, %v828
        %v882 = vsub.f32 %v786, %v830
        %v883 = vsub.f32 %v787, %v832
        %v884 = vsub.f32 %v788, %v834
        %v885 = vsub.f32 %v789, %v836
        %v886 = vsub.f32 %v790, %v838
        %v887 = vsub.f32 %v791, %v840
        %v888 = vsub.f32 %v792, %v842
        %v889 = vsub.f32 %v793, %v844
        %v890 = vsub.f32 %v794, %v846
        %v891 = vsub.f32 %v795, %v848
        %v892 = vsub.f32 %v796, %v850
        %v893 = vsub.f32 %v797, %v852
        %v894 = vsub.f32 %v798, %v854
        %v895 = vsub.f32 %v799, %v856
        %v896 = vsub.f32 %v800, %v858
        %v897 = vsub.f32 %v801, %v860
        %v898 = vsub.f32 %v802, %v862
        %v899 = vsub.f32 %v803, %v864
        %v900 = vsub.f32 %v804, %v866
        %v901 = vsub.f32 %v805, %v868
        %v902 = vsub.f32 %v806, %v870
        %v903 = vmul.f32 %v871, 1.442695
        %v904 = vpow.pop %v903
        %v905 = vmul.f32 %v872, 1.442695
        %v906 = vpow.pop %v905
        %v907 = vmul.f32 %v873, 1.442695
        %v908 = vpow.pop %v907
        %v909 = vmul.f32 %v874, 1.442695
        %v910 = vpow.pop %v909
        %v911 = vmul.f32 %v875, 1.442695
        %v912 = vpow.pop %v911
        %v913 = vmul.f32 %v876, 1.442695
        %v914 = vpow.pop %v913
        %v915 = vmul.f32 %v877, 1.442695
        %v916 = vpow.pop %v915
        %v917 = vmul.f32 %v878, 1.442695
        %v918 = vpow.pop %v917
        %v919 = vmul.f32 %v879, 1.442695
        %v920 = vpow.pop %v919
        %v921 = vmul.f32 %v880, 1.442695
        %v922 = vpow.pop %v921
        %v923 = vmul.f32 %v881, 1.442695
        %v924 = vpow.pop %v923
        %v925 = vmul.f32 %v882, 1.442695
        %v926 = vpow.pop %v925
        %v927 = vmul.f32 %v883, 1.442695
        %v928 = vpow.pop %v927
        %v929 = vmul.f32 %v884, 1.442695
        %v930 = vpow.pop %v929
        %v931 = vmul.f32 %v885, 1.442695
        %v932 = vpow.pop %v931
        %v933 = vmul.f32 %v886, 1.442695
        %v934 = vpow.pop %v933
        %v935 = vmul.f32 %v887, 1.442695
        %v936 = vpow.pop %v935
        %v937 = vmul.f32 %v888, 1.442695
        %v938 = vpow.pop %v937
        %v939 = vmul.f32 %v889, 1.442695
        %v940 = vpow.pop %v939
        %v941 = vmul.f32 %v890, 1.442695
        %v942 = vpow.pop %v941
        %v943 = vmul.f32 %v891, 1.442695
        %v944 = vpow.pop %v943
        %v945 = vmul.f32 %v892, 1.442695
        %v946 = vpow.pop %v945
        %v947 = vmul.f32 %v893, 1.442695
        %v948 = vpow.pop %v947
        %v949 = vmul.f32 %v894, 1.442695
        %v950 = vpow.pop %v949
        %v951 = vmul.f32 %v895, 1.442695
        %v952 = vpow.pop %v951
        %v953 = vmul.f32 %v896, 1.442695
        %v954 = vpow.pop %v953
        %v955 = vmul.f32 %v897, 1.442695
        %v956 = vpow.pop %v955
        %v957 = vmul.f32 %v898, 1.442695
        %v958 = vpow.pop %v957
        %v959 = vmul.f32 %v899, 1.442695
        %v960 = vpow.pop %v959
        %v961 = vmul.f32 %v900, 1.442695
        %v962 = vpow.pop %v961
        %v963 = vmul.f32 %v901, 1.442695
        %v964 = vpow.pop %v963
        %v965 = vmul.f32 %v902, 1.442695
        %v966 = vpow.pop %v965
        %967 = vadd.xlane.f32.xlu0 %v904
        %v968 = vpop.xlane.xlu0 %967
        %969 = vadd.xlane.f32.xlu0 %v906
        %v970 = vpop.xlane.xlu0 %969
        %971 = vadd.xlane.f32.xlu0 %v908
        %v972 = vpop.xlane.xlu0 %971
        %973 = vadd.xlane.f32.xlu0 %v910
        %v974 = vpop.xlane.xlu0 %973
        %975 = vadd.xlane.f32.xlu0 %v912
        %v976 = vpop.xlane.xlu0 %975
        %977 = vadd.xlane.f32.xlu0 %v914
        %v978 = vpop.xlane.xlu0 %977
        %979 = vadd.xlane.f32.xlu0 %v916
        %v980 = vpop.xlane.xlu0 %979
        %981 = vadd.xlane.f32.xlu0 %v918
        %v982 = vpop.xlane.xlu0 %981
        %983 = vadd.xlane.f32.xlu0 %v920
        %v984 = vpop.xlane.xlu0 %983
        %985 = vadd.xlane.f32.xlu0 %v922
        %v986 = vpop.xlane.xlu0 %985
        %987 = vadd.xlane.f32.xlu0 %v924
        %v988 = vpop.xlane.xlu0 %987
        %989 = vadd.xlane.f32.xlu0 %v926
        %v990 = vpop.xlane.xlu0 %989
        %991 = vadd.xlane.f32.xlu0 %v928
        %v992 = vpop.xlane.xlu0 %991
        %993 = vadd.xlane.f32.xlu0 %v930
        %v994 = vpop.xlane.xlu0 %993
        %995 = vadd.xlane.f32.xlu0 %v932
        %v996 = vpop.xlane.xlu0 %995
        %997 = vadd.xlane.f32.xlu0 %v934
        %v998 = vpop.xlane.xlu0 %997
        %999 = vadd.xlane.f32.xlu0 %v936
        %v1000 = vpop.xlane.xlu0 %999
        %1001 = vadd.xlane.f32.xlu0 %v938
        %v1002 = vpop.xlane.xlu0 %1001
        %1003 = vadd.xlane.f32.xlu0 %v940
        %v1004 = vpop.xlane.xlu0 %1003
        %1005 = vadd.xlane.f32.xlu0 %v942
        %v1006 = vpop.xlane.xlu0 %1005
        %1007 = vadd.xlane.f32.xlu0 %v944
        %v1008 = vpop.xlane.xlu0 %1007
        %1009 = vadd.xlane.f32.xlu0 %v946
        %v1010 = vpop.xlane.xlu0 %1009
        %1011 = vadd.xlane.f32.xlu0 %v948
        %v1012 = vpop.xlane.xlu0 %1011
        %1013 = vadd.xlane.f32.xlu0 %v950
        %v1014 = vpop.xlane.xlu0 %1013
        %1015 = vadd.xlane.f32.xlu0 %v952
        %v1016 = vpop.xlane.xlu0 %1015
        %1017 = vadd.xlane.f32.xlu0 %v954
        %v1018 = vpop.xlane.xlu0 %1017
        %1019 = vadd.xlane.f32.xlu0 %v956
        %v1020 = vpop.xlane.xlu0 %1019
        %1021 = vadd.xlane.f32.xlu0 %v958
        %v1022 = vpop.xlane.xlu0 %1021
        %1023 = vadd.xlane.f32.xlu0 %v960
        %v1024 = vpop.xlane.xlu0 %1023
        %1025 = vadd.xlane.f32.xlu0 %v962
        %v1026 = vpop.xlane.xlu0 %1025
        %1027 = vadd.xlane.f32.xlu0 %v964
        %v1028 = vpop.xlane.xlu0 %1027
        %1029 = vadd.xlane.f32.xlu0 %v966
        %v1030 = vpop.xlane.xlu0 %1029
        %v1031 = vrcp.pop %v968
        %v1032 = vrcp.pop %v970
        %v1033 = vrcp.pop %v972
        %v1034 = vrcp.pop %v974
        %v1035 = vrcp.pop %v976
        %v1036 = vrcp.pop %v978
        %v1037 = vrcp.pop %v980
        %v1038 = vrcp.pop %v982
        %v1039 = vrcp.pop %v984
        %v1040 = vrcp.pop %v986
        %v1041 = vrcp.pop %v988
        %v1042 = vrcp.pop %v990
        %v1043 = vrcp.pop %v992
        %v1044 = vrcp.pop %v994
        %v1045 = vrcp.pop %v996
        %v1046 = vrcp.pop %v998
        %v1047 = vrcp.pop %v1000
        %v1048 = vrcp.pop %v1002
        %v1049 = vrcp.pop %v1004
        %v1050 = vrcp.pop %v1006
        %v1051 = vrcp.pop %v1008
        %v1052 = vrcp.pop %v1010
        %v1053 = vrcp.pop %v1012
        %v1054 = vrcp.pop %v1014
        %v1055 = vrcp.pop %v1016
        %v1056 = vrcp.pop %v1018
        %v1057 = vrcp.pop %v1020
        %v1058 = vrcp.pop %v1022
        %v1059 = vrcp.pop %v1024
        %v1060 = vrcp.pop %v1026
        %v1061 = vrcp.pop %v1028
        %v1062 = vrcp.pop %v1030
        %v1063 = vmul.f32 %v904, %v1031
        %v1064 = vmul.f32 %v906, %v1032
        %v1065 = vmul.f32 %v908, %v1033
        %v1066 = vmul.f32 %v910, %v1034
        %v1067 = vmul.f32 %v912, %v1035
        %v1068 = vmul.f32 %v914, %v1036
        %v1069 = vmul.f32 %v916, %v1037
        %v1070 = vmul.f32 %v918, %v1038
        %v1071 = vmul.f32 %v920, %v1039
        %v1072 = vmul.f32 %v922, %v1040
        %v1073 = vmul.f32 %v924, %v1041
        %v1074 = vmul.f32 %v926, %v1042
        %v1075 = vmul.f32 %v928, %v1043
        %v1076 = vmul.f32 %v930, %v1044
        %v1077 = vmul.f32 %v932, %v1045
        %v1078 = vmul.f32 %v934, %v1046
        %v1079 = vmul.f32 %v936, %v1047
        %v1080 = vmul.f32 %v938, %v1048
        %v1081 = vmul.f32 %v940, %v1049
        %v1082 = vmul.f32 %v942, %v1050
        %v1083 = vmul.f32 %v944, %v1051
        %v1084 = vmul.f32 %v946, %v1052
        %v1085 = vmul.f32 %v948, %v1053
        %v1086 = vmul.f32 %v950, %v1054
        %v1087 = vmul.f32 %v952, %v1055
        %v1088 = vmul.f32 %v954, %v1056
        %v1089 = vmul.f32 %v956, %v1057
        %v1090 = vmul.f32 %v958, %v1058
        %v1091 = vmul.f32 %v960, %v1059
        %v1092 = vmul.f32 %v962, %v1060
        %v1093 = vmul.f32 %v964, %v1061
        %v1094 = vmul.f32 %v966, %v1062
        %v1095 = vpack.c.bf16 %v1064, %v1063
        %v1096 = vpack.c.bf16 %v1066, %v1065
        %v1097 = vpack.c.bf16 %v1068, %v1067
        %v1098 = vpack.c.bf16 %v1070, %v1069
        %v1099 = vpack.c.bf16 %v1072, %v1071
        %v1100 = vpack.c.bf16 %v1074, %v1073
        %v1101 = vpack.c.bf16 %v1076, %v1075
        %v1102 = vpack.c.bf16 %v1078, %v1077
        %v1103 = vpack.c.bf16 %v1080, %v1079
        %v1104 = vpack.c.bf16 %v1082, %v1081
        %v1105 = vpack.c.bf16 %v1084, %v1083
        %v1106 = vpack.c.bf16 %v1086, %v1085
        %v1107 = vpack.c.bf16 %v1088, %v1087
        %v1108 = vpack.c.bf16 %v1090, %v1089
        %v1109 = vpack.c.bf16 %v1092, %v1091
        %v1110 = vpack.c.bf16 %v1094, %v1093
        %1111 = vmatprep.subr.bf16.mxu0 0
        %1112 = vmatpush1.bf16.xpose.msra.mxu0 %v1102
        %1113 = vmatprep.subr.bf16.mxu0 0
        %1114 = vmatpush1.bf16.xpose.msra.mxu0 %v1101
        %1115 = vmatprep.subr.bf16.mxu0 0
        %1116 = vmatpush1.bf16.xpose.msra.mxu0 %v1100
        %1117 = vmatprep.subr.bf16.mxu0 0
        %1118 = vmatpush1.bf16.xpose.msra.mxu0 %v1099
        %1119 = vmatprep.subr.bf16.mxu0 0
        %1120 = vmatpush1.bf16.xpose.msra.mxu0 %v1098
        %1121 = vmatprep.subr.bf16.mxu0 0
        %1122 = vmatpush1.bf16.xpose.msra.mxu0 %v1097
        %1123 = vmatprep.subr.bf16.mxu0 0
        %1124 = vmatpush1.bf16.xpose.msra.mxu0 %v1096
        %1125 = vmatprep.subr.bf16.mxu0 0
        %1126 = vmatpush1.bf16.xpose.msra.mxu0 %v1095
        %1127 = vmatprep.subr.bf16.mxu0 0
        %1128 = vmatpush2.bf16.xpose.msra.mxu0 %v1110
        %1129 = vmatprep.subr.bf16.mxu0 0
        %1130 = vmatpush2.bf16.xpose.msra.mxu0 %v1109
        %1131 = vmatprep.subr.bf16.mxu0 0
        %1132 = vmatpush2.bf16.xpose.msra.mxu0 %v1108
        %1133 = vmatprep.subr.bf16.mxu0 0
        %1134 = vmatpush2.bf16.xpose.msra.mxu0 %v1107
        %1135 = vmatprep.subr.bf16.mxu0 0
        %1136 = vmatpush2.bf16.xpose.msra.mxu0 %v1106
        %1137 = vmatprep.subr.bf16.mxu0 0
        %1138 = vmatpush2.bf16.xpose.msra.mxu0 %v1105
        %1139 = vmatprep.subr.bf16.mxu0 0
        %1140 = vmatpush2.bf16.xpose.msra.mxu0 %v1104
        %1141 = vmatprep.subr.bf16.mxu0 0
        %1142 = vmatpush2.bf16.xpose.msra.mxu0 %v1103
        %1143 = vmatprep.mubr.bf16.mxu0 0
        %1144 = vmatmul.mubr.bf16.gmra.mxu0 %v290
        %v1145 = vpop.f32.mrf.mxu0
        %v1146 = vadd.f32 0.0, %v1145
        %v1147 = vpop.f32.mrf.mxu0
        %v1148 = vadd.f32 0.0, %v1147
        %v1149 = vpop.f32.mrf.mxu0
        %v1150 = vpop.f32.mrf.mxu0
        %1151 = vdwg.mxu0
        %v1152 = vsub.f32 1.0, %v383
        %v1153 = vsub.f32 1.0, %v385
        %v1154 = vlaneseq
        %v1155 = vshrl.u32 %v1154, 7
        %v1156 = vsub.s32 0, %v1155
        %v1157 = vrot.slane %v1152, %v1156
        %v1158 = vlaneseq
        %v1159 = vshrl.u32 %v1158, 7
        %v1160 = vsub.s32 0, %v1159
        %v1161 = vrot.slane %v1153, %v1160
        %v1162 = vmul.f32 %v1157, %v1146
        %v1163 = vmul.f32 %v1161, %v1148
        %v1164 = vunpack.c.l.bf16 %v289
        %v1165 = vlaneseq
        %v1166 = vshrl.u32 %v1165, 7
        %v1167 = vsub.s32 0, %v1166
        %v1168 = vrot.slane %v383, %v1167
        %v1169 = vlaneseq
        %v1170 = vshrl.u32 %v1169, 7
        %v1171 = vsub.s32 0, %v1170
        %v1172 = vrot.slane %v385, %v1171
        %v1174 = vcombine.high %v1164, %v1164
        %v1176 = vmul.f32 %v1168, %v1164
        %v1177 = vmul.f32 %v1172, %v1174
        %v1178 = vadd.f32 %v1162, %v1176
        %v1179 = vadd.f32 %v1163, %v1177
        %v1182 = vcombine.low %v1178, %v1179
        %1184 = vst [vmem:[%s268] sm:$0xff] %v1182
        %s1185 = sand.u32 %s163, 1
        %s1186 = scalar_lea.sflag [#allocation3], %s1185
        %s1187 = sand.u32 %s163, 1
        %s1188 = smul.addr %s1187, 8
        %s1189 = scalar_lea.vmem [#allocation2], %s1188
        // Predicated region
        $region41: #{tpu_custom_call.1} parent=39 // pred_check
          %p1190 = pneg %p173
        $region42: #{tpu_custom_call.1} parent=39 // pred_check_branch
          %1192 = sbr.rel (%p1190) target = $region44
        $region43: #{tpu_custom_call.1} parent=39 // pred_region
          %s1193 = smul.u32 2, %s24
          %s1195 = ssub.s32 128, 128
          %1196 = vsyncadd %s1186, %s1195
          %s1197 = smul.addr %s23, 2
          %s1198 = sadd.s32 %s1193, %s1197
          %s1199 = smul.addr %s1198, 64
          %s1200 = scalar_lea.hbm %s5, %s1199
          %s1202 = sshll.u32 %s1189, 4
          %s1203 = int_to_ptr.vmem [resolvable:$true] %s1202
          %1205 = dma.vmem_to_hbm [thread:$0]  %s1203, 128, %s1200, %s1186
        $region44: #{tpu_custom_call.1} parent=39 // pred_fallthru
          _
      $region40: #{tpu_custom_call.1} parent=5 // pred_fallthru
        _
      %p1206 = scmp.le.s32.totalorder 2, %s14
      // Predicated region
      $region45: #{tpu_custom_call.1} parent=5 // pred_check
        %p1207 = pneg %p1206
      $region46: #{tpu_custom_call.1} parent=5 // pred_check_branch
        %1209 = sbr.rel (%p1207) target = $region48
      $region47: #{tpu_custom_call.1} parent=5 // pred_region
        %s1210 = ssub.s32 %s14, 2
        // Predicated region
        $region49: #{tpu_custom_call.1} parent=47 // pred_check
          %p1211 = pneg %p179
        $region50: #{tpu_custom_call.1} parent=47 // pred_check_branch
          %1213 = sbr.rel (%p1211) target = $region52
        $region51: #{tpu_custom_call.1} parent=47 // pred_region
          %s1214 = sand.u32 %s164, 1
          %s1215 = scalar_lea.sflag [#allocation3], %s1214
          %s1216 = sand.u32 %s164, 1
          %s1217 = smul.addr %s1216, 8
          %s1218 = scalar_lea.vmem [#allocation2], %s1217
          %1219 = dma.done %s1215, 128
        $region52: #{tpu_custom_call.1} parent=47 // pred_fallthru
          _
      $region48: #{tpu_custom_call.1} parent=5 // pred_fallthru
        _
    $region6: #{tpu_custom_call.1} parent=1 // loop_footer
      %s18 = sadd.s32 1, %s14
    $region7: #{tpu_custom_call.1} parent=1 // loop_footer_branch
      %13 = sbr.rel target = $region3
    $region8: #{tpu_custom_call.1} parent=1 // loop_exit
      _
    %1220 = vsyncpa [#allocation3], 1
    %s1221 = scalar_lea.sflag [#allocation3], 1
    %1222 = vsyncpa %s1221, 1

</llo_original>
